<compile_context>
chip_gen: v6e
topology: v6e:2x2x1
jax: 0.10.0
libtpu: 0.0.40
codegen_flags: <defaults>
</compile_context>

<pallas_src>
import jax
import jax.numpy as jnp
from jax.experimental import pallas as pl
from jax.experimental.pallas import tpu as pltpu


def _round_up(a: int, b: int) -> int:
    return (a + b - 1) // b * b


# ----------------------------- kernels -----------------------------

def _linear_residual_tiled_kernel(x_ref, wT_ref, b_ref, o_ref, acc_ref):
    """grid = (Mi, Nj, Kk) with tn == tk; output tile is resident across k."""
    j = pl.program_id(1)
    k = pl.program_id(2)

    @pl.when(k == 0)
    def _init():
        # Seed the accumulator with the bias so the epilogue is a pure store.
        acc_ref[...] = jnp.broadcast_to(
            b_ref[...].astype(jnp.float32), acc_ref.shape
        )

    acc_ref[...] += jnp.dot(
        x_ref[...], wT_ref[...], preferred_element_type=jnp.float32
    )

    # Residual: since tn == tk, the x LHS tile at k == j is exactly the
    # output-aligned (i, j) tile -> no second x input stream needed.
    @pl.when(k == j)
    def _residual():
        acc_ref[...] += x_ref[...].astype(jnp.float32)

    @pl.when(k == pl.num_programs(2) - 1)
    def _store():
        o_ref[...] = acc_ref[...].astype(o_ref.dtype)


def _linear_residual_fast_kernel(x_ref, wT_ref, b_ref, o_ref):
    """Single-K fast path: full feature dim in one tile, no acc scratch."""
    y = jnp.dot(x_ref[...], wT_ref[...], preferred_element_type=jnp.float32)
    y = y + b_ref[...].astype(jnp.float32) + x_ref[...].astype(jnp.float32)
    o_ref[...] = y.astype(o_ref.dtype)


# ----------------------------- wrapper -----------------------------

class LinearResidual:
    """out = x @ W^T + b + x. Weight/bias are transposed + padded ONCE at init."""

    def __init__(self, w, b, *, max_m_tile=256, max_nk_tile=1024,
                 vmem_budget_bytes=24 * 1024 * 1024):
        out_f, in_f = w.shape
        assert in_f == out_f, "residual add requires in_features == out_features"
        assert b.shape == (out_f,)
        self.features = in_f
        self.fp = _round_up(in_f, 128)
        self.max_m_tile = int(max_m_tile)
        self.max_nk_tile = int(max_nk_tile)
        self.vmem_budget_bytes = int(vmem_budget_bytes)

        fp = self.fp
        # Hoisted out of the per-call path: (out, in) -> (in, out) == (K, N_out), padded.
        self.wT_pad = jnp.zeros((fp, fp), w.dtype).at[:in_f, :out_f].set(w.T)
        self.b_pad = jnp.zeros((1, fp), b.dtype).at[0, :out_f].set(b)

    def _pick_nk_tile(self, tm: int, itemsize: int) -> int:
        """Largest multiple-of-128 divisor of fp (<= cap) whose working set fits VMEM."""
        fp = self.fp
        cap = min(fp, self.max_nk_tile)
        for t in range(cap, 127, -128):
            if fp % t:
                continue
            # 2x (double-buffered) x/w/out/bias blocks + one f32 accumulator.
            ws = 2 * itemsize * (tm * t + t * t + tm * t + t) + 4 * tm * t
            if ws <= self.vmem_budget_bytes:
                return t
        return 128

    def __call__(self, x):
        n, in_f = x.shape
        assert in_f == self.features
        dtype = x.dtype
        itemsize = jnp.dtype(dtype).itemsize
        sublane = {4: 8, 2: 16, 1: 32}.get(itemsize, 8)  # packed sublane alignment

        fp = self.fp
        tm = min(self.max_m_tile, _round_up(n, sublane))
        mp = _round_up(n, tm)                 # pad rows to a multiple of tm
        t = self._pick_nk_tile(tm, itemsize)  # tn == tk

        if (mp, fp) != (n, in_f):
            x_pad = jnp.zeros((mp, fp), dtype).at[:n, :in_f].set(x)
        else:
            x_pad = x

        wT = self.wT_pad if self.wT_pad.dtype == dtype else self.wT_pad.astype(dtype)
        bias = self.b_pad if self.b_pad.dtype == dtype else self.b_pad.astype(dtype)

        cost = pl.CostEstimate(
            flops=2 * n * in_f * in_f + 2 * n * in_f,
            transcendentals=0,
            bytes_accessed=(2 * n * in_f + in_f * in_f + in_f) * itemsize,
        )
        cparams = dict(vmem_limit_bytes=32 * 1024 * 1024)

        grid_i = mp // tm
        grid_j = fp // t

        if grid_j == 1:
            # Fast path: whole feature dim in one tile, no K reduction, no scratch.
            out_pad = pl.pallas_call(
                _linear_residual_fast_kernel,
                out_shape=jax.ShapeDtypeStruct((mp, fp), dtype),
                grid_spec=pltpu.PrefetchScalarGridSpec(
                    num_scalar_prefetch=0,
                    grid=(grid_i,),
                    in_specs=[
                        pl.BlockSpec((tm, fp), lambda i: (i, 0)),
                        pl.BlockSpec((fp, fp), lambda i: (0, 0)),
                        pl.BlockSpec((1, fp), lambda i: (0, 0)),
                    ],
                    out_specs=pl.BlockSpec((tm, fp), lambda i: (i, 0)),
                ),
                compiler_params=pltpu.CompilerParams(
                    dimension_semantics=("parallel",), **cparams
                ),
                cost_estimate=cost,
            )(x_pad, wT, bias)
        else:
            out_pad = pl.pallas_call(
                _linear_residual_tiled_kernel,
                out_shape=jax.ShapeDtypeStruct((mp, fp), dtype),
                grid_spec=pltpu.PrefetchScalarGridSpec(
                    num_scalar_prefetch=0,
                    grid=(grid_i, grid_j, grid_j),
                    in_specs=[
                        # x as matmul LHS (also reused as residual when k == j)
                        pl.BlockSpec((tm, t), lambda i, j, k: (i, k)),
                        # pre-transposed weight (K, N_out)
                        pl.BlockSpec((t, t), lambda i, j, k: (k, j)),
                        # bias
                        pl.BlockSpec((1, t), lambda i, j, k: (0, j)),
                    ],
                    out_specs=pl.BlockSpec((tm, t), lambda i, j, k: (i, j)),
                    scratch_shapes=[pltpu.VMEM((tm, t), jnp.float32)],
                ),
                compiler_params=pltpu.CompilerParams(
                    dimension_semantics=("parallel", "parallel", "arbitrary"),
                    **cparams,
                ),
                cost_estimate=cost,
            )(x_pad, wT, bias)

        return out_pad[:n, :in_f]


# ----------------------------- self-test -----------------------------

if __name__ == "__main__":
    key = jax.random.PRNGKey(0)
    kx, kw, kb, kx2, kw2, kb2, kx3 = jax.random.split(key, 7)
    hi = jax.lax.Precision.HIGHEST

    # ---- Module-faithful small shape: x1 = randn(1, 3), Linear(3, 3) ----
    N, F = 1, 3
    x = jax.random.normal(kx, (N, F), dtype=jnp.float32)
    bound = 1.0 / (F ** 0.5)  # nn.Linear default init range
    w = jax.random.uniform(kw, (F, F), minval=-bound, maxval=bound, dtype=jnp.float32)
    b = jax.random.uniform(kb, (F,), minval=-bound, maxval=bound, dtype=jnp.float32)

    mod = LinearResidual(w, b)
    out = mod(x)
    jax.block_until_ready(out)
    ref = jnp.matmul(x, w.T, precision=hi) + b + x
    assert out.shape == ref.shape
    assert jnp.allclose(out, ref, atol=1e-5, rtol=1e-5), "mismatch vs reference (small)"

    # ---- Larger shape -> single-K fast path (fp == tn == tk) ----
    N2, F2 = 96, 384
    x2 = jax.random.normal(kx2, (N2, F2), dtype=jnp.float32)
    bound2 = 1.0 / (F2 ** 0.5)
    w2 = jax.random.uniform(kw2, (F2, F2), minval=-bound2, maxval=bound2, dtype=jnp.float32)
    b2 = jax.random.uniform(kb2, (F2,), minval=-bound2, maxval=bound2, dtype=jnp.float32)

    mod2 = LinearResidual(w2, b2)
    out2 = mod2(x2)
    jax.block_until_ready(out2)
    ref2 = jnp.matmul(x2, w2.T, precision=hi) + b2 + x2
    assert jnp.allclose(out2, ref2, atol=2e-4, rtol=2e-4), "mismatch vs reference (fast path)"

    # ---- Force the tiled K-reduction path: tm=256 (padded rows), tn=tk=128, grid=(2,3,3) ----
    N3 = 320
    x3 = jax.random.normal(kx3, (N3, F2), dtype=jnp.float32)
    mod3 = LinearResidual(w2, b2, max_nk_tile=128)
    out3 = mod3(x3)
    jax.block_until_ready(out3)
    ref3 = jnp.matmul(x3, w2.T, precision=hi) + b2 + x3
    assert jnp.allclose(out3, ref3, atol=2e-4, rtol=2e-4), "mismatch vs reference (tiled path)"

    print("KERNEL_OK")
</pallas_src>

<mosaic_0001>
module attributes {stable_mosaic.version = 11 : i64} {
  func.func @_linear_residual_fast_kernel(%arg0: i32, %arg1: memref<8x128xf32, #tpu.memory_space<vmem>>, %arg2: memref<128x128xf32, #tpu.memory_space<vmem>>, %arg3: memref<1x128xf32, #tpu.memory_space<vmem>>, %arg4: memref<8x128xf32, #tpu.memory_space<vmem>>) attributes {dimension_semantics = [#tpu.dimension_semantics<parallel>], iteration_bounds = array<i64: 1>, scalar_prefetch = 0 : i64, scratch_operands = 0 : i64, tpu.core_type = #tpu.core_type<tc>, window_params = [{transform_indices = @transform_0, window_bounds = array<i64: 8, 128>}, {pipeline_mode = #tpu.pipeline_mode<synchronous>, transform_indices = @transform_1, window_bounds = array<i64: 128, 128>}, {pipeline_mode = #tpu.pipeline_mode<synchronous>, transform_indices = @transform_2, window_bounds = array<i64: 1, 128>}, {transform_indices = @transform_3, window_bounds = array<i64: 8, 128>}]} {
    %c0 = arith.constant 0 : index
    %c0_0 = arith.constant 0 : index
    %0 = vector.load %arg1[%c0, %c0_0] : memref<8x128xf32, #tpu.memory_space<vmem>>, vector<8x128xf32>
    %c0_1 = arith.constant 0 : index
    %c0_2 = arith.constant 0 : index
    %1 = vector.load %arg2[%c0_1, %c0_2] : memref<128x128xf32, #tpu.memory_space<vmem>>, vector<128x128xf32>
    %cst = arith.constant dense<0.000000e+00> : vector<8x128xf32>
    %2 = tpu.matmul %0, %1, %cst {dimension_numbers = #tpu.dot_dimension_numbers<[1], [0], [0], [1], [0, 0, 1, 1], [], []>} : vector<8x128xf32>, vector<128x128xf32>, vector<8x128xf32> -> vector<8x128xf32>
    %c0_3 = arith.constant 0 : index
    %c0_4 = arith.constant 0 : index
    %3 = vector.load %arg3[%c0_3, %c0_4] : memref<1x128xf32, #tpu.memory_space<vmem>>, vector<1x128xf32>
    %4 = vector.broadcast %3 : vector<1x128xf32> to vector<8x128xf32>
    %5 = arith.addf %2, %4 : vector<8x128xf32>
    %c0_5 = arith.constant 0 : index
    %c0_6 = arith.constant 0 : index
    %6 = vector.load %arg1[%c0_5, %c0_6] : memref<8x128xf32, #tpu.memory_space<vmem>>, vector<8x128xf32>
    %7 = arith.addf %5, %6 : vector<8x128xf32>
    %c0_7 = arith.constant 0 : index
    %c0_8 = arith.constant 0 : index
    %8 = vector.load %arg4[%c0_7, %c0_8] : memref<8x128xf32, #tpu.memory_space<vmem>>, vector<8x128xf32>
    tpu.vector_store %arg4[%c0_7, %c0_8], %7 {strides = array<i32>} : memref<8x128xf32, #tpu.memory_space<vmem>>, vector<8x128xf32>,
    return
  }
  func.func @transform_0(%arg0: i32) -> (i32, i32) {
    %c0_i32 = arith.constant 0 : i32
    %c0_i32_0 = arith.constant 0 : i32
    return %arg0, %c0_i32 : i32, i32
  }
  func.func @transform_1(%arg0: i32) -> (i32, i32) {
    %c0_i32 = arith.constant 0 : i32
    %c0_i32_0 = arith.constant 0 : i32
    %c0_i32_1 = arith.constant 0 : i32
    return %c0_i32, %c0_i32_0 : i32, i32
  }
  func.func @transform_2(%arg0: i32) -> (i32, i32) {
    %c0_i32 = arith.constant 0 : i32
    %c0_i32_0 = arith.constant 0 : i32
    %c0_i32_1 = arith.constant 0 : i32
    return %c0_i32, %c0_i32_0 : i32, i32
  }
  func.func @transform_3(%arg0: i32) -> (i32, i32) {
    %c0_i32 = arith.constant 0 : i32
    %c0_i32_0 = arith.constant 0 : i32
    return %arg0, %c0_i32 : i32, i32
  }
}

</mosaic_0001>

<llo_original>
// kernel: tpu_custom_call.1
$region0: #{tpu_custom_call.1}
  #allocation0 [shape = 'u32[]', space=smem, size = 0x4, offset = 0x4, fixed_abs, tag = 'smem constant byte address 0x4 - core index']
  #allocation1 [shape = 'u32[144,128]{1,0:T(1,128)}', space=vmem, size = 0x12000, scoped, tag = 'internal scratch']
  %s0 = inlined_call_operand.hbm [shape: f32[8,128], index: 0, kind: input, shape index: {}]
  %s1 = inlined_call_operand.hbm [shape: f32[128,128], index: 1, kind: input, shape index: {}]
  %s2 = inlined_call_operand.vmem [shape: f32[1,128], index: 2, kind: input, shape index: {}]
  %s3 = inlined_call_operand.hbm [shape: f32[8,128], index: 3, kind: output, shape index: {}]
  %s4 = sld [smem:[#allocation0]]
  $region30: #{tpu_custom_call.1} parent=0
    _
  %s6 = ssub.s32 1, %s4
  %s7 = scalar_select 0, %s6, %s4
  $region1: #{tpu_custom_call.1} parent=0
    #allocation2 [shape = 'u8[4096]{0}', space=vmem, size = 0x1000, scoped, tag = 'input window, operand 0, single buffered']
    #allocation3 [shape = 's32[1]{0}', space=sflag, size = 0x4, scoped, tag = 'scoped memory for tpu_custom_call.1']
    #allocation4 [shape = 's32[1]{0}', space=sflag, size = 0x4, scoped, tag = 'scoped memory for tpu_custom_call.1']
    #allocation5 [shape = 'u8[65536]{0}', space=vmem, size = 0x10000, scoped, tag = 'input window, operand 1, single buffered']
    #allocation6 [shape = 's32[1]{0}', space=sflag, size = 0x4, scoped, tag = 'scoped memory for tpu_custom_call.1']
    #allocation7 [shape = 'u8[4096]{0}', space=vmem, size = 0x1000, scoped, tag = 'output window, operand 0, single buffered']
    %8 = vsyncpa [#allocation3], 0
    %9 = vsyncpa [#allocation6], 0
    %10 = vsyncpa [#allocation4], 0
    // Predicated region
    $region2: #{tpu_custom_call.1} parent=1 // pred_check
      _
    $region3: #{tpu_custom_call.1} parent=1 // pred_check_branch
      %12 = sbr.rel (0) target = $region5
    $region4: #{tpu_custom_call.1} parent=1 // pred_region
      %s14 = ssub.s32 128, 128
      %15 = vsyncadd [#allocation3], %s14
      %s17 = sshll.u32 [#allocation2], 4
      %s18 = int_to_ptr.vmem [resolvable:$true] %s17
      %20 = dma.hbm_to_vmem [thread:$0]  %s0, 128, %s18, [#allocation3]
    $region5: #{tpu_custom_call.1} parent=1 // pred_fallthru
      _
    // Predicated region
    $region6: #{tpu_custom_call.1} parent=1 // pred_check
      _
    $region7: #{tpu_custom_call.1} parent=1 // pred_check_branch
      %22 = sbr.rel (0) target = $region9
    $region8: #{tpu_custom_call.1} parent=1 // pred_region
      %s24 = ssub.s32 2048, 2048
      %25 = vsyncadd [#allocation6], %s24
      %s26 = sshll.u32 [#allocation5], 4
      %s27 = int_to_ptr.vmem [resolvable:$true] %s26
      %32 = dma.hbm_to_vmem [thread:$0]  %s1, 2048, %s27, [#allocation6], 128, 128, 8
    $region9: #{tpu_custom_call.1} parent=1 // pred_fallthru
      _
    // Predicated region
    $region10: #{tpu_custom_call.1} parent=1 // pred_check
      _
    $region11: #{tpu_custom_call.1} parent=1 // pred_check_branch
      %34 = sbr.rel (0) target = $region13
    $region12: #{tpu_custom_call.1} parent=1 // pred_region
      _
    $region13: #{tpu_custom_call.1} parent=1 // pred_fallthru
      _
    // Predicated region
    $region14: #{tpu_custom_call.1} parent=1 // pred_check
      _
    $region15: #{tpu_custom_call.1} parent=1 // pred_check_branch
      %36 = sbr.rel (0) target = $region17
    $region16: #{tpu_custom_call.1} parent=1 // pred_region
      %37 = dma.done [#allocation3], 128
    $region17: #{tpu_custom_call.1} parent=1 // pred_fallthru
      _
    // Predicated region
    $region18: #{tpu_custom_call.1} parent=1 // pred_check
      _
    $region19: #{tpu_custom_call.1} parent=1 // pred_check_branch
      %39 = sbr.rel (0) target = $region21
    $region20: #{tpu_custom_call.1} parent=1 // pred_region
      %40 = dma.done [#allocation6], 2048
    $region21: #{tpu_custom_call.1} parent=1 // pred_fallthru
      _
    %v41 = vld [vmem:[#allocation2] sm:$0xff]
    %v42 = vld [vmem:[#allocation5] sm:$0xff]
    %v43 = vld [vmem:[#allocation5 + $0x8] sm:$0xff]
    %v44 = vld [vmem:[#allocation5 + $0x10] sm:$0xff]
    %v45 = vld [vmem:[#allocation5 + $0x18] sm:$0xff]
    %v46 = vld [vmem:[#allocation5 + $0x20] sm:$0xff]
    %v47 = vld [vmem:[#allocation5 + $0x28] sm:$0xff]
    %v48 = vld [vmem:[#allocation5 + $0x30] sm:$0xff]
    %v49 = vld [vmem:[#allocation5 + $0x38] sm:$0xff]
    %v50 = vld [vmem:[#allocation5 + $0x40] sm:$0xff]
    %v51 = vld [vmem:[#allocation5 + $0x48] sm:$0xff]
    %v52 = vld [vmem:[#allocation5 + $0x50] sm:$0xff]
    %v53 = vld [vmem:[#allocation5 + $0x58] sm:$0xff]
    %v54 = vld [vmem:[#allocation5 + $0x60] sm:$0xff]
    %v55 = vld [vmem:[#allocation5 + $0x68] sm:$0xff]
    %v56 = vld [vmem:[#allocation5 + $0x70] sm:$0xff]
    %v57 = vld [vmem:[#allocation5 + $0x78] sm:$0xff]
    %v58 = vld [vmem:[%s2] sm:$0x1]
    %v60 = vlaneseq
    %v61 = vshrl.u32 %v60, 7
    %v62 = vsub.s32 0, %v61
    %v63 = vrot.slane %v58, %v62
    %65 = vmatprep.subr.mxu0 0.0
    %66 = vmatpush1.msra.mxu0 %v57
    %67 = vmatprep.subr.mxu0 0.0
    %68 = vmatpush1.msra.mxu0 %v56
    %69 = vmatprep.subr.mxu0 0.0
    %70 = vmatpush1.msra.mxu0 %v55
    %71 = vmatprep.subr.mxu0 0.0
    %72 = vmatpush1.msra.mxu0 %v54
    %73 = vmatprep.subr.mxu0 0.0
    %74 = vmatpush1.msra.mxu0 %v53
    %75 = vmatprep.subr.mxu0 0.0
    %76 = vmatpush1.msra.mxu0 %v52
    %77 = vmatprep.subr.mxu0 0.0
    %78 = vmatpush1.msra.mxu0 %v51
    %79 = vmatprep.subr.mxu0 0.0
    %80 = vmatpush1.msra.mxu0 %v50
    %81 = vmatprep.subr.mxu0 0.0
    %82 = vmatpush1.msra.mxu0 %v49
    %83 = vmatprep.subr.mxu0 0.0
    %84 = vmatpush1.msra.mxu0 %v48
    %85 = vmatprep.subr.mxu0 0.0
    %86 = vmatpush1.msra.mxu0 %v47
    %87 = vmatprep.subr.mxu0 0.0
    %88 = vmatpush1.msra.mxu0 %v46
    %89 = vmatprep.subr.mxu0 0.0
    %90 = vmatpush1.msra.mxu0 %v45
    %91 = vmatprep.subr.mxu0 0.0
    %92 = vmatpush1.msra.mxu0 %v44
    %93 = vmatprep.subr.mxu0 0.0
    %94 = vmatpush1.msra.mxu0 %v43
    %95 = vmatprep.subr.mxu0 0.0
    %96 = vmatpush1.msra.mxu0 %v42
    %97 = vmatprep.subr.mxu0 0.0
    %98 = vmatpush2.msra.mxu0 0.0
    %99 = vmatprep.subr.mxu0 0.0
    %100 = vmatpush2.msra.mxu0 0.0
    %101 = vmatprep.subr.mxu0 0.0
    %102 = vmatpush2.msra.mxu0 0.0
    %103 = vmatprep.subr.mxu0 0.0
    %104 = vmatpush2.msra.mxu0 0.0
    %105 = vmatprep.subr.mxu0 0.0
    %106 = vmatpush2.msra.mxu0 0.0
    %107 = vmatprep.subr.mxu0 0.0
    %108 = vmatpush2.msra.mxu0 0.0
    %109 = vmatprep.subr.mxu0 0.0
    %110 = vmatpush2.msra.mxu0 0.0
    %111 = vmatprep.subr.mxu0 0.0
    %112 = vmatpush2.msra.mxu0 0.0
    %113 = vmatprep.subr.mxu0 0.0
    %114 = vmatpush2.msra.mxu0 0.0
    %115 = vmatprep.subr.mxu0 0.0
    %116 = vmatpush2.msra.mxu0 0.0
    %117 = vmatprep.subr.mxu0 0.0
    %118 = vmatpush2.msra.mxu0 0.0
    %119 = vmatprep.subr.mxu0 0.0
    %120 = vmatpush2.msra.mxu0 0.0
    %121 = vmatprep.subr.mxu0 0.0
    %122 = vmatpush2.msra.mxu0 0.0
    %123 = vmatprep.subr.mxu0 0.0
    %124 = vmatpush2.msra.mxu0 0.0
    %125 = vmatprep.subr.mxu0 0.0
    %126 = vmatpush2.msra.mxu0 0.0
    %127 = vmatprep.subr.mxu0 0.0
    %128 = vmatpush2.msra.mxu0 0.0
    %129 = vmatprep.mubr.f32.mxu0 0.0
    %130 = vmatmul.mubr.f32.gmra.mxu0 %v41
    %v131 = vpop.f32.mrf.mxu0
    %v132 = vadd.f32 %v63, %v131
    %v133 = vpop.f32.mrf.mxu0
    %134 = vdwg.mxu0
    %v135 = vadd.f32 %v132, %v41
    %136 = vst [vmem:[#allocation7] sm:$0xff] %v135
    // Predicated region
    $region22: #{tpu_custom_call.1} parent=1 // pred_check
      _
    $region23: #{tpu_custom_call.1} parent=1 // pred_check_branch
      %138 = sbr.rel (0) target = $region25
    $region24: #{tpu_custom_call.1} parent=1 // pred_region
      %s140 = ssub.s32 128, 128
      %141 = vsyncadd [#allocation4], %s140
      %s143 = sshll.u32 [#allocation7], 4
      %s144 = int_to_ptr.vmem [resolvable:$true] %s143
      %146 = dma.vmem_to_hbm [thread:$0]  %s144, 128, %s3, [#allocation4]
    $region25: #{tpu_custom_call.1} parent=1 // pred_fallthru
      _
    // Predicated region
    $region26: #{tpu_custom_call.1} parent=1 // pred_check
      _
    $region27: #{tpu_custom_call.1} parent=1 // pred_check_branch
      %148 = sbr.rel (0) target = $region29
    $region28: #{tpu_custom_call.1} parent=1 // pred_region
      %149 = dma.done [#allocation4], 128
    $region29: #{tpu_custom_call.1} parent=1 // pred_fallthru
      _
    %150 = vsyncpa [#allocation3], 1
    %151 = vsyncpa [#allocation6], 1
    %152 = vsyncpa [#allocation4], 1

</llo_original>
